<compile_context>
chip_gen: v6e
topology: v6e:2x2x1
jax: 0.10.0
libtpu: 0.0.40
codegen_flags: <defaults>
</compile_context>

<pallas_src>
import numpy as np
import jax
import jax.numpy as jnp
from jax.experimental import pallas as pl
from jax.experimental.pallas import tpu as pltpu

GAMMA = 1.4
R_GAS = 287.058

RHO_CH, T_CH, M_CH = 0, 4, 5


# ---------------- in-kernel AUSM math (f32 tiles, roll axis = last) ----------

def _mach_split(x):
    """Return (M_plus(x), M_minus(x)) sharing a single |x|<=1 predicate."""
    lt1 = jnp.abs(x) <= 1.0
    mp = jnp.where(lt1, 0.25 * jnp.square(x + 1.0), jnp.maximum(x, 0.0))
    mm = jnp.where(lt1, -0.25 * jnp.square(x - 1.0), jnp.minimum(x, 0.0))
    return mp, mm


def _mass_flux_sum(Rho, T, M):
    """sum(F_mass) over one tile.

    roll commutes with elementwise ops, so M_plus/M_minus are evaluated once
    per field (4 evaluations instead of 8) and shifted afterwards.
    """
    ax = M.ndim - 1
    W = M.shape[-1]

    a = jnp.sqrt(jnp.abs(GAMMA * R_GAS * T))          # sound speed a(T)
    ra = Rho * a

    mpM, mmM = _mach_split(M)
    mpA, mmA = _mach_split(ra)

    # shift_R == roll(+1);  shift_L == roll(-1) == roll(W-1)
    ML_M = pltpu.roll(mpM, 1, ax) + mmM               # M_L(M)
    MR_M = mpM + pltpu.roll(mmM, W - 1, ax)           # M_R(M)
    ML_A = pltpu.roll(mpA, 1, ax) + mmA               # M_L(rho*a)
    MR_A = mpA + pltpu.roll(mmA, W - 1, ax)           # M_R(rho*a)

    ra_R = pltpu.roll(ra, 1, ax)                      # shift_R(rho*a)
    ra_L = pltpu.roll(ra, W - 1, ax)                  # shift_L(rho*a)

    zero = jnp.zeros_like(ra)
    phi_L = jnp.where(ML_A > 0.0, ra, jnp.where(ML_A < 0.0, ra_R, zero))
    phi_R = jnp.where(MR_A > 0.0, ra, jnp.where(MR_A < 0.0, ra_L, zero))

    F = MR_M * phi_R - ML_M * phi_L
    return jnp.sum(F)


# ---------------- kernel ------------------------------------------------------

def _mass_loss_kernel(rho_ref, t_ref, m_ref, out_ref):
    # rho/t/m refs: (TB, 1, TH, W) channel planes; out_ref: (1, 1, 8, 128).
    def squeeze_chan(x):
        # (TB, 1, TH, W) -> (TB, TH, W); dropping a unit major dim is layout-free.
        return x.reshape(x.shape[0], x.shape[2], x.shape[3])

    Rho = squeeze_chan(rho_ref[...])
    T = squeeze_chan(t_ref[...])
    M = squeeze_chan(m_ref[...])

    s = _mass_flux_sum(Rho, T, M)

    # Place the block's partial sum in element [0, 0] of a lane-dense (8, 128)
    # output tile (no cross-block accumulation -> grid axes can be parallel).
    r = jax.lax.broadcasted_iota(jnp.int32, (8, 128), 0)
    c = jax.lax.broadcasted_iota(jnp.int32, (8, 128), 1)
    tile = jnp.where((r == 0) & (c == 0), s, 0.0).astype(jnp.float32)
    out_ref[...] = tile[None, None, :, :]


# ---------------- tiling ------------------------------------------------------

def _choose_tiles(B, H, W, elem_bytes=4, per_channel_block_budget=4 << 20):
    """Pick (TB, TH) so 3 channels x 2 pipeline buffers x block stays well
    inside scoped VMEM on every generation (v7x: 64 MiB physical)."""
    def blk_bytes(tb, th):
        return tb * th * W * elem_bytes

    # Prefer a single grid step over the whole field.
    if blk_bytes(B, H) <= per_channel_block_budget:
        return B, H
    # Next: full H per block, tile the batch.
    if blk_bytes(1, H) <= per_channel_block_budget:
        tb = max(d for d in range(1, B + 1)
                 if B % d == 0 and blk_bytes(d, H) <= per_channel_block_budget)
        return tb, H
    # Tile H with a divisor that keeps (8, 128) sublane alignment.
    cand = [d for d in range(H, 0, -1)
            if H % d == 0 and d % 8 == 0
            and blk_bytes(1, d) <= per_channel_block_budget]
    if cand:
        return 1, cand[0]
    # Fallback: whole rows (cannot legally tile H further).
    return 1, H


# ---------------- wrapper -----------------------------------------------------

def mass_conservation_loss(output, ground=None):
    """output: (B, C>=6, H, W); returns scalar f32 = F_mass.sum()."""
    B, C, H, W = output.shape
    assert C >= 6
    if output.dtype != jnp.float32:
        output = output.astype(jnp.float32)

    TB, TH = _choose_tiles(B, H, W)
    nb, nh = B // TB, H // TH

    def chan_spec(ch):
        # Read only channel `ch` planes straight from the NCHW tensor.
        return pl.BlockSpec((TB, 1, TH, W),
                            lambda bi, hi, ch=ch: (bi, ch, hi, 0))

    out_spec = pl.BlockSpec((1, 1, 8, 128), lambda bi, hi: (bi, hi, 0, 0))

    n_elem = B * H * W
    cost = pl.CostEstimate(
        flops=60 * n_elem,
        transcendentals=n_elem,                       # sqrt per element
        bytes_accessed=3 * n_elem * 4 + nb * nh * 8 * 128 * 4,
    )

    partials = pl.pallas_call(
        _mass_loss_kernel,
        out_shape=jax.ShapeDtypeStruct((nb, nh, 8, 128), jnp.float32),
        grid_spec=pltpu.PrefetchScalarGridSpec(
            num_scalar_prefetch=0,
            grid=(nb, nh),
            in_specs=[chan_spec(RHO_CH), chan_spec(T_CH), chan_spec(M_CH)],
            out_specs=out_spec,
        ),
        compiler_params=pltpu.CompilerParams(
            dimension_semantics=("parallel", "parallel"),
            vmem_limit_bytes=64 << 20),
        cost_estimate=cost,
    )(output, output, output)

    loss = jnp.sum(partials)

    # TODO(synk): the torch forward's debug `print(result.mean(), result.sum())`
    # is a host-side side effect only and is omitted here.
    if ground is not None:
        # The torch code subtracts an *identical recomputation* of
        # F_mass(output) (it does not use `ground`), so the residual is 0.
        loss = loss - loss
    return loss


# ---------------- pure-JAX reference (mirrors the torch code) -----------------

def _ref_loss(output):
    Rho = output[:, 0, :, :]
    T = output[:, 4, :, :]
    M = output[:, 5, :, :]

    def shift_R(t): return jnp.roll(t, 1, axis=-1)
    def shift_L(t): return jnp.roll(t, -1, axis=-1)

    def M_plus(m):
        lt1 = (jnp.abs(m) <= 1).astype(m.dtype)
        gt1 = (jnp.abs(m) > 1).astype(m.dtype)
        return 0.25 * jnp.square(m + 1) * lt1 + m * (m > 0) * gt1

    def M_minus(m):
        lt1 = (jnp.abs(m) <= 1).astype(m.dtype)
        gt1 = (jnp.abs(m) > 1).astype(m.dtype)
        return -0.25 * jnp.square(m - 1) * lt1 + m * (m < 0) * gt1

    def M_L(m): return M_plus(shift_R(m)) + M_minus(m)
    def M_R(m): return M_plus(m) + M_minus(shift_L(m))

    def Phi_L(t):
        m_l = M_L(t)
        return shift_R(t) * (m_l < 0) + t * (m_l > 0)

    def Phi_R(t):
        m_r = M_R(t)
        return t * (m_r > 0) + shift_L(t) * (m_r < 0)

    a = jnp.sqrt(jnp.abs(GAMMA * R_GAS * T))
    rho_a = Rho * a
    F = M_R(M) * Phi_R(rho_a) - M_L(M) * Phi_L(rho_a)
    return jnp.sum(F)


if __name__ == "__main__":
    key = jax.random.PRNGKey(0)
    # (B, C, H, W); C=6 channels = [Rho, U, V, P, T, M]; W=128 (lane-native).
    x = jax.random.normal(key, (2, 6, 8, 128), dtype=jnp.float32)

    loss = jax.block_until_ready(mass_conservation_loss(x))
    ref = jax.block_until_ready(_ref_loss(x))

    np.testing.assert_allclose(np.asarray(loss), np.asarray(ref),
                               rtol=5e-4, atol=0.5)
    print("KERNEL_OK")
</pallas_src>

<mosaic_0001>
module attributes {stable_mosaic.version = 11 : i64} {
  func.func @_mass_loss_kernel(%arg0: i32, %arg1: i32, %arg2: memref<2x1x8x128xf32, #tpu.memory_space<vmem>>, %arg3: memref<2x1x8x128xf32, #tpu.memory_space<vmem>>, %arg4: memref<2x1x8x128xf32, #tpu.memory_space<vmem>>, %arg5: memref<1x1x8x128xf32, #tpu.memory_space<vmem>>) attributes {dimension_semantics = [#tpu.dimension_semantics<parallel>, #tpu.dimension_semantics<parallel>], iteration_bounds = array<i64: 1, 1>, scalar_prefetch = 0 : i64, scratch_operands = 0 : i64, tpu.core_type = #tpu.core_type<tc>, window_params = [{transform_indices = @transform_0, window_bounds = array<i64: 2, 1, 8, 128>}, {transform_indices = @transform_1, window_bounds = array<i64: 2, 1, 8, 128>}, {transform_indices = @transform_2, window_bounds = array<i64: 2, 1, 8, 128>}, {transform_indices = @transform_3, window_bounds = array<i64: 1, 1, 8, 128>}]} {
    %c0 = arith.constant 0 : index
    %c0_0 = arith.constant 0 : index
    %c0_1 = arith.constant 0 : index
    %c0_2 = arith.constant 0 : index
    %0 = vector.load %arg2[%c0, %c0_0, %c0_1, %c0_2] : memref<2x1x8x128xf32, #tpu.memory_space<vmem>>, vector<2x1x8x128xf32>
    %1 = vector.shape_cast %0 : vector<2x1x8x128xf32> to vector<2x8x128xf32>
    %c0_3 = arith.constant 0 : index
    %c0_4 = arith.constant 0 : index
    %c0_5 = arith.constant 0 : index
    %c0_6 = arith.constant 0 : index
    %2 = vector.load %arg3[%c0_3, %c0_4, %c0_5, %c0_6] : memref<2x1x8x128xf32, #tpu.memory_space<vmem>>, vector<2x1x8x128xf32>
    %3 = vector.shape_cast %2 : vector<2x1x8x128xf32> to vector<2x8x128xf32>
    %c0_7 = arith.constant 0 : index
    %c0_8 = arith.constant 0 : index
    %c0_9 = arith.constant 0 : index
    %c0_10 = arith.constant 0 : index
    %4 = vector.load %arg4[%c0_7, %c0_8, %c0_9, %c0_10] : memref<2x1x8x128xf32, #tpu.memory_space<vmem>>, vector<2x1x8x128xf32>
    %5 = vector.shape_cast %4 : vector<2x1x8x128xf32> to vector<2x8x128xf32>
    %cst = arith.constant 401.881195 : f32
    %6 = vector.broadcast %cst : f32 to vector<2x8x128xf32>
    %7 = arith.mulf %6, %3 : vector<2x8x128xf32>
    %8 = math.absf %7 : vector<2x8x128xf32>
    %9 = math.sqrt %8 : vector<2x8x128xf32>
    %10 = arith.mulf %1, %9 : vector<2x8x128xf32>
    %11 = math.absf %5 : vector<2x8x128xf32>
    %cst_11 = arith.constant 1.000000e+00 : f32
    %12 = vector.broadcast %cst_11 : f32 to vector<2x8x128xf32>
    %13 = arith.cmpf ole, %11, %12 : vector<2x8x128xf32>
    %cst_12 = arith.constant 1.000000e+00 : f32
    %14 = vector.broadcast %cst_12 : f32 to vector<2x8x128xf32>
    %15 = arith.addf %5, %14 : vector<2x8x128xf32>
    %16 = arith.mulf %15, %15 : vector<2x8x128xf32>
    %cst_13 = arith.constant 2.500000e-01 : f32
    %17 = vector.broadcast %cst_13 : f32 to vector<2x8x128xf32>
    %18 = arith.mulf %17, %16 : vector<2x8x128xf32>
    %cst_14 = arith.constant 0.000000e+00 : f32
    %19 = vector.broadcast %cst_14 : f32 to vector<2x8x128xf32>
    %20 = arith.maximumf %5, %19 : vector<2x8x128xf32>
    %21 = arith.select %13, %18, %20 : vector<2x8x128xi1>, vector<2x8x128xf32>
    %cst_15 = arith.constant 1.000000e+00 : f32
    %22 = vector.broadcast %cst_15 : f32 to vector<2x8x128xf32>
    %23 = arith.subf %5, %22 : vector<2x8x128xf32>
    %24 = arith.mulf %23, %23 : vector<2x8x128xf32>
    %cst_16 = arith.constant -2.500000e-01 : f32
    %25 = vector.broadcast %cst_16 : f32 to vector<2x8x128xf32>
    %26 = arith.mulf %25, %24 : vector<2x8x128xf32>
    %cst_17 = arith.constant 0.000000e+00 : f32
    %27 = vector.broadcast %cst_17 : f32 to vector<2x8x128xf32>
    %28 = arith.minimumf %5, %27 : vector<2x8x128xf32>
    %29 = arith.select %13, %26, %28 : vector<2x8x128xi1>, vector<2x8x128xf32>
    %30 = math.absf %10 : vector<2x8x128xf32>
    %cst_18 = arith.constant 1.000000e+00 : f32
    %31 = vector.broadcast %cst_18 : f32 to vector<2x8x128xf32>
    %32 = arith.cmpf ole, %30, %31 : vector<2x8x128xf32>
    %cst_19 = arith.constant 1.000000e+00 : f32
    %33 = vector.broadcast %cst_19 : f32 to vector<2x8x128xf32>
    %34 = arith.addf %10, %33 : vector<2x8x128xf32>
    %35 = arith.mulf %34, %34 : vector<2x8x128xf32>
    %cst_20 = arith.constant 2.500000e-01 : f32
    %36 = vector.broadcast %cst_20 : f32 to vector<2x8x128xf32>
    %37 = arith.mulf %36, %35 : vector<2x8x128xf32>
    %cst_21 = arith.constant 0.000000e+00 : f32
    %38 = vector.broadcast %cst_21 : f32 to vector<2x8x128xf32>
    %39 = arith.maximumf %10, %38 : vector<2x8x128xf32>
    %40 = arith.select %32, %37, %39 : vector<2x8x128xi1>, vector<2x8x128xf32>
    %cst_22 = arith.constant 1.000000e+00 : f32
    %41 = vector.broadcast %cst_22 : f32 to vector<2x8x128xf32>
    %42 = arith.subf %10, %41 : vector<2x8x128xf32>
    %43 = arith.mulf %42, %42 : vector<2x8x128xf32>
    %cst_23 = arith.constant -2.500000e-01 : f32
    %44 = vector.broadcast %cst_23 : f32 to vector<2x8x128xf32>
    %45 = arith.mulf %44, %43 : vector<2x8x128xf32>
    %cst_24 = arith.constant 0.000000e+00 : f32
    %46 = vector.broadcast %cst_24 : f32 to vector<2x8x128xf32>
    %47 = arith.minimumf %10, %46 : vector<2x8x128xf32>
    %48 = arith.select %32, %45, %47 : vector<2x8x128xi1>, vector<2x8x128xf32>
    %c1_i32 = arith.constant 1 : i32
    %49 = tpu.dynamic_rotate %21 by %c1_i32 dim 2 : vector<2x8x128xf32>, i32 -> vector<2x8x128xf32>
    %50 = arith.addf %49, %29 : vector<2x8x128xf32>
    %c127_i32 = arith.constant 127 : i32
    %51 = tpu.dynamic_rotate %29 by %c127_i32 dim 2 : vector<2x8x128xf32>, i32 -> vector<2x8x128xf32>
    %52 = arith.addf %21, %51 : vector<2x8x128xf32>
    %c1_i32_25 = arith.constant 1 : i32
    %53 = tpu.dynamic_rotate %40 by %c1_i32_25 dim 2 : vector<2x8x128xf32>, i32 -> vector<2x8x128xf32>
    %54 = arith.addf %53, %48 : vector<2x8x128xf32>
    %c127_i32_26 = arith.constant 127 : i32
    %55 = tpu.dynamic_rotate %48 by %c127_i32_26 dim 2 : vector<2x8x128xf32>, i32 -> vector<2x8x128xf32>
    %56 = arith.addf %40, %55 : vector<2x8x128xf32>
    %c1_i32_27 = arith.constant 1 : i32
    %57 = tpu.dynamic_rotate %10 by %c1_i32_27 dim 2 : vector<2x8x128xf32>, i32 -> vector<2x8x128xf32>
    %c127_i32_28 = arith.constant 127 : i32
    %58 = tpu.dynamic_rotate %10 by %c127_i32_28 dim 2 : vector<2x8x128xf32>, i32 -> vector<2x8x128xf32>
    %cst_29 = arith.constant 0.000000e+00 : f32
    %59 = vector.broadcast %cst_29 : f32 to vector<2x8x128xf32>
    %cst_30 = arith.constant 0.000000e+00 : f32
    %60 = vector.broadcast %cst_30 : f32 to vector<2x8x128xf32>
    %61 = arith.cmpf ogt, %54, %60 : vector<2x8x128xf32>
    %cst_31 = arith.constant 0.000000e+00 : f32
    %62 = vector.broadcast %cst_31 : f32 to vector<2x8x128xf32>
    %63 = arith.cmpf olt, %54, %62 : vector<2x8x128xf32>
    %64 = arith.select %63, %57, %59 : vector<2x8x128xi1>, vector<2x8x128xf32>
    %65 = arith.select %61, %10, %64 : vector<2x8x128xi1>, vector<2x8x128xf32>
    %cst_32 = arith.constant 0.000000e+00 : f32
    %66 = vector.broadcast %cst_32 : f32 to vector<2x8x128xf32>
    %67 = arith.cmpf ogt, %56, %66 : vector<2x8x128xf32>
    %cst_33 = arith.constant 0.000000e+00 : f32
    %68 = vector.broadcast %cst_33 : f32 to vector<2x8x128xf32>
    %69 = arith.cmpf olt, %56, %68 : vector<2x8x128xf32>
    %70 = arith.select %69, %58, %59 : vector<2x8x128xi1>, vector<2x8x128xf32>
    %71 = arith.select %67, %10, %70 : vector<2x8x128xi1>, vector<2x8x128xf32>
    %72 = arith.mulf %52, %71 : vector<2x8x128xf32>
    %73 = arith.mulf %50, %65 : vector<2x8x128xf32>
    %74 = arith.subf %72, %73 : vector<2x8x128xf32>
    %75 = vector.shape_cast %74 : vector<2x8x128xf32> to vector<1x2x8x128xf32>
    %cst_34 = arith.constant dense<0.000000e+00> : vector<1xf32>
    %76 = vector.multi_reduction <add>, %75, %cst_34 [1, 2, 3] : vector<1x2x8x128xf32> to vector<1xf32>
    %77 = vector.shape_cast %76 : vector<1xf32> to vector<1x1x1x1xf32>
    %78 = vector.extract %77[0, 0, 0, 0] : f32 from vector<1x1x1x1xf32>
    %79 = tpu.iota {dimensions = array<i32: 0>} : vector<8x128xi32>
    %80 = tpu.iota {dimensions = array<i32: 1>} : vector<8x128xi32>
    %c0_i32 = arith.constant 0 : i32
    %81 = vector.broadcast %c0_i32 : i32 to vector<8x128xi32>
    %82 = arith.cmpi eq, %79, %81 : vector<8x128xi32>
    %c0_i32_35 = arith.constant 0 : i32
    %83 = vector.broadcast %c0_i32_35 : i32 to vector<8x128xi32>
    %84 = arith.cmpi eq, %80, %83 : vector<8x128xi32>
    %85 = arith.andi %82, %84 : vector<8x128xi1>
    %cst_36 = arith.constant 0.000000e+00 : f32
    %86 = vector.broadcast %78 : f32 to vector<8x128xf32>
    %87 = vector.broadcast %cst_36 : f32 to vector<8x128xf32>
    %88 = arith.select %85, %86, %87 : vector<8x128xi1>, vector<8x128xf32>
    %89 = vector.shape_cast %88 : vector<8x128xf32> to vector<1x1x8x128xf32>
    %c0_37 = arith.constant 0 : index
    %c0_38 = arith.constant 0 : index
    %c0_39 = arith.constant 0 : index
    %c0_40 = arith.constant 0 : index
    %90 = vector.load %arg5[%c0_37, %c0_38, %c0_39, %c0_40] : memref<1x1x8x128xf32, #tpu.memory_space<vmem>>, vector<1x1x8x128xf32>
    tpu.vector_store %arg5[%c0_37, %c0_38, %c0_39, %c0_40], %89 {strides = array<i32>} : memref<1x1x8x128xf32, #tpu.memory_space<vmem>>, vector<1x1x8x128xf32>,
    return
  }
  func.func @transform_0(%arg0: i32, %arg1: i32) -> (i32, i32, i32, i32) {
    %c0_i32 = arith.constant 0 : i32
    %c0_i32_0 = arith.constant 0 : i32
    %c0_i32_1 = arith.constant 0 : i32
    return %arg0, %c0_i32, %arg1, %c0_i32_0 : i32, i32, i32, i32
  }
  func.func @transform_1(%arg0: i32, %arg1: i32) -> (i32, i32, i32, i32) {
    %c4_i32 = arith.constant 4 : i32
    %c0_i32 = arith.constant 0 : i32
    %c0_i32_0 = arith.constant 0 : i32
    return %arg0, %c4_i32, %arg1, %c0_i32 : i32, i32, i32, i32
  }
  func.func @transform_2(%arg0: i32, %arg1: i32) -> (i32, i32, i32, i32) {
    %c5_i32 = arith.constant 5 : i32
    %c0_i32 = arith.constant 0 : i32
    %c0_i32_0 = arith.constant 0 : i32
    return %arg0, %c5_i32, %arg1, %c0_i32 : i32, i32, i32, i32
  }
  func.func @transform_3(%arg0: i32, %arg1: i32) -> (i32, i32, i32, i32) {
    %c0_i32 = arith.constant 0 : i32
    %c0_i32_0 = arith.constant 0 : i32
    %c0_i32_1 = arith.constant 0 : i32
    return %arg0, %arg1, %c0_i32, %c0_i32_0 : i32, i32, i32, i32
  }
}

</mosaic_0001>

<llo_original>
// kernel: tpu_custom_call.1
$region0: #{tpu_custom_call.1}
  #allocation0 [shape = 'u32[]', space=smem, size = 0x4, offset = 0x4, fixed_abs, tag = 'smem constant byte address 0x4 - core index']
  #allocation1 [shape = 'u32[144,128]{1,0:T(1,128)}', space=vmem, size = 0x12000, scoped, tag = 'internal scratch']
  %s0 = inlined_call_operand.hbm [shape: f32[2,6,8,128], index: 0, kind: input, shape index: {}]
  %s1 = inlined_call_operand.hbm [shape: f32[2,6,8,128], index: 1, kind: input, shape index: {}]
  %s2 = inlined_call_operand.hbm [shape: f32[2,6,8,128], index: 2, kind: input, shape index: {}]
  %s3 = inlined_call_operand.hbm [shape: f32[1,1,8,128], index: 3, kind: output, shape index: {}]
  %s4 = sld [smem:[#allocation0]]
  $region34: #{tpu_custom_call.1} parent=0
    _
  %s6 = ssub.s32 1, %s4
  %s7 = scalar_select 0, %s6, %s4
  $region1: #{tpu_custom_call.1} parent=0
    #allocation2 [shape = 'u8[8192]{0}', space=vmem, size = 0x2000, scoped, tag = 'input window, operand 0, single buffered']
    #allocation3 [shape = 's32[1]{0}', space=sflag, size = 0x4, scoped, tag = 'scoped memory for tpu_custom_call.1']
    #allocation4 [shape = 's32[1]{0}', space=sflag, size = 0x4, scoped, tag = 'scoped memory for tpu_custom_call.1']
    #allocation5 [shape = 'u8[8192]{0}', space=vmem, size = 0x2000, scoped, tag = 'input window, operand 1, single buffered']
    #allocation6 [shape = 's32[1]{0}', space=sflag, size = 0x4, scoped, tag = 'scoped memory for tpu_custom_call.1']
    #allocation7 [shape = 'u8[8192]{0}', space=vmem, size = 0x2000, scoped, tag = 'input window, operand 2, single buffered']
    #allocation8 [shape = 'u8[4096]{0}', space=vmem, size = 0x1000, scoped, tag = 'output window, operand 0, single buffered']
    %8 = vsyncpa [#allocation3], 0
    %9 = vsyncpa [#allocation6], 0
    %10 = vsyncpa [#allocation4], 0
    // Predicated region
    $region2: #{tpu_custom_call.1} parent=1 // pred_check
      _
    $region3: #{tpu_custom_call.1} parent=1 // pred_check_branch
      %12 = sbr.rel (0) target = $region5
    $region4: #{tpu_custom_call.1} parent=1 // pred_region
      %s14 = ssub.s32 256, 256
      %15 = vsyncadd [#allocation3], %s14
      %s16 = sshll.u32 [#allocation2], 4
      %s17 = int_to_ptr.vmem [resolvable:$true] %s16
      %22 = dma.hbm_to_vmem [thread:$0]  %s0, 256, %s17, [#allocation3], 768, 128, 8
    $region5: #{tpu_custom_call.1} parent=1 // pred_fallthru
      _
    // Predicated region
    $region6: #{tpu_custom_call.1} parent=1 // pred_check
      _
    $region7: #{tpu_custom_call.1} parent=1 // pred_check_branch
      %24 = sbr.rel (0) target = $region9
    $region8: #{tpu_custom_call.1} parent=1 // pred_region
      %s26 = ssub.s32 256, 256
      %27 = vsyncadd [#allocation6], %s26
      %s28 = scalar_lea.hbm %s1, 512
      %s29 = sshll.u32 [#allocation5], 4
      %s30 = int_to_ptr.vmem [resolvable:$true] %s29
      %35 = dma.hbm_to_vmem [thread:$0]  %s28, 256, %s30, [#allocation6], 768, 128, 8
    $region9: #{tpu_custom_call.1} parent=1 // pred_fallthru
      _
    // Predicated region
    $region10: #{tpu_custom_call.1} parent=1 // pred_check
      _
    $region11: #{tpu_custom_call.1} parent=1 // pred_check_branch
      %37 = sbr.rel (0) target = $region13
    $region12: #{tpu_custom_call.1} parent=1 // pred_region
      %s39 = ssub.s32 256, 256
      %40 = vsyncadd [#allocation6], %s39
      %s41 = scalar_lea.hbm %s2, 640
      %s42 = sshll.u32 [#allocation7], 4
      %s43 = int_to_ptr.vmem [resolvable:$true] %s42
      %48 = dma.hbm_to_vmem [thread:$0]  %s41, 256, %s43, [#allocation6], 768, 128, 8
    $region13: #{tpu_custom_call.1} parent=1 // pred_fallthru
      _
    // Predicated region
    $region14: #{tpu_custom_call.1} parent=1 // pred_check
      _
    $region15: #{tpu_custom_call.1} parent=1 // pred_check_branch
      %50 = sbr.rel (0) target = $region17
    $region16: #{tpu_custom_call.1} parent=1 // pred_region
      %51 = dma.done [#allocation3], 256
    $region17: #{tpu_custom_call.1} parent=1 // pred_fallthru
      _
    // Predicated region
    $region18: #{tpu_custom_call.1} parent=1 // pred_check
      _
    $region19: #{tpu_custom_call.1} parent=1 // pred_check_branch
      %53 = sbr.rel (0) target = $region21
    $region20: #{tpu_custom_call.1} parent=1 // pred_region
      %54 = dma.done [#allocation6], 256
    $region21: #{tpu_custom_call.1} parent=1 // pred_fallthru
      _
    // Predicated region
    $region22: #{tpu_custom_call.1} parent=1 // pred_check
      _
    $region23: #{tpu_custom_call.1} parent=1 // pred_check_branch
      %56 = sbr.rel (0) target = $region25
    $region24: #{tpu_custom_call.1} parent=1 // pred_region
      %57 = dma.done [#allocation6], 256
    $region25: #{tpu_custom_call.1} parent=1 // pred_fallthru
      _
    %v58 = vld [vmem:[#allocation2] sm:$0xff]
    %v59 = vld [vmem:[#allocation2 + $0x8] sm:$0xff]
    %v60 = vld [vmem:[#allocation5] sm:$0xff]
    %v61 = vld [vmem:[#allocation5 + $0x8] sm:$0xff]
    %v62 = vld [vmem:[#allocation7] sm:$0xff]
    %v63 = vld [vmem:[#allocation7 + $0x8] sm:$0xff]
    %v64 = vmul.f32 %v60, 401.8812
    %v65 = vmul.f32 %v61, 401.8812
    %v66 = vand.u32 2147483647, %v64
    %v67 = vand.u32 2147483647, %v65
    %v68 = vrsqrt.pop %v66
    %v69 = vmul.f32 %v66, %v68
    %vm70 = vcmp.eq.f32.partialorder %v66, inf
    %v71 = vsel %vm70, %v66, %v69
    %vm72 = vcmp.eq.f32.partialorder %v66, 0.0
    %v73 = vand.u32 %v66, 2147483648
    %v74 = vsel %vm72, %v73, %v71
    %v75 = vrsqrt.pop %v67
    %v76 = vmul.f32 %v67, %v75
    %vm77 = vcmp.eq.f32.partialorder %v67, inf
    %v78 = vsel %vm77, %v67, %v76
    %vm79 = vcmp.eq.f32.partialorder %v67, 0.0
    %v80 = vand.u32 %v67, 2147483648
    %v81 = vsel %vm79, %v80, %v78
    %v82 = vmul.f32 %v58, %v74
    %v83 = vmul.f32 %v59, %v81
    %v84 = vand.u32 2147483647, %v62
    %v85 = vand.u32 2147483647, %v63
    %vm86 = vcmp.le.f32.partialorder %v84, 1.0
    %vm87 = vcmp.le.f32.partialorder %v85, 1.0
    %v88 = vadd.f32 %v62, 1.0
    %v89 = vadd.f32 %v63, 1.0
    %v90 = vmul.f32 %v88, %v88
    %v91 = vmul.f32 %v89, %v89
    %v92 = vmul.f32 %v90, 0.25
    %v93 = vmul.f32 %v91, 0.25
    %v94 = vmax.f32 %v62, 0.0
    %v95 = vmax.f32 %v63, 0.0
    %v96 = vsel %vm86, %v92, %v94
    %v97 = vsel %vm87, %v93, %v95
    %v98 = vsub.f32 %v62, 1.0
    %v99 = vsub.f32 %v63, 1.0
    %v100 = vmul.f32 %v98, %v98
    %v101 = vmul.f32 %v99, %v99
    %v102 = vmul.f32 %v100, -0.25
    %v103 = vmul.f32 %v101, -0.25
    %v104 = vmin.f32 %v62, 0.0
    %v105 = vmin.f32 %v63, 0.0
    %v106 = vsel %vm86, %v102, %v104
    %v107 = vsel %vm87, %v103, %v105
    %v108 = vand.u32 2147483647, %v82
    %v109 = vand.u32 2147483647, %v83
    %vm110 = vcmp.le.f32.partialorder %v108, 1.0
    %vm111 = vcmp.le.f32.partialorder %v109, 1.0
    %v112 = vadd.f32 %v82, 1.0
    %v113 = vadd.f32 %v83, 1.0
    %v114 = vmul.f32 %v112, %v112
    %v115 = vmul.f32 %v113, %v113
    %v116 = vmul.f32 %v114, 0.25
    %v117 = vmul.f32 %v115, 0.25
    %v118 = vmax.f32 %v82, 0.0
    %v119 = vmax.f32 %v83, 0.0
    %v120 = vsel %vm110, %v116, %v118
    %v121 = vsel %vm111, %v117, %v119
    %v122 = vsub.f32 %v82, 1.0
    %v123 = vsub.f32 %v83, 1.0
    %v124 = vmul.f32 %v122, %v122
    %v125 = vmul.f32 %v123, %v123
    %v126 = vmul.f32 %v124, -0.25
    %v127 = vmul.f32 %v125, -0.25
    %v128 = vmin.f32 %v82, 0.0
    %v129 = vmin.f32 %v83, 0.0
    %v130 = vsel %vm110, %v126, %v128
    %v131 = vsel %vm111, %v127, %v129
    %132 = vrot.lane.b32.xlu0 %v96, 1
    %v133 = vpop.permute.xlu0 %132
    %134 = vrot.lane.b32.xlu0 %v97, 1
    %v135 = vpop.permute.xlu0 %134
    %v136 = vadd.f32 %v133, %v106
    %v137 = vadd.f32 %v135, %v107
    %138 = vrot.lane.b32.xlu0 %v106, 127
    %v139 = vpop.permute.xlu0 %138
    %140 = vrot.lane.b32.xlu0 %v107, 127
    %v141 = vpop.permute.xlu0 %140
    %v142 = vadd.f32 %v96, %v139
    %v143 = vadd.f32 %v97, %v141
    %144 = vrot.lane.b32.xlu0 %v120, 1
    %v145 = vpop.permute.xlu0 %144
    %146 = vrot.lane.b32.xlu0 %v121, 1
    %v147 = vpop.permute.xlu0 %146
    %v148 = vadd.f32 %v145, %v130
    %v149 = vadd.f32 %v147, %v131
    %150 = vrot.lane.b32.xlu0 %v130, 127
    %v151 = vpop.permute.xlu0 %150
    %152 = vrot.lane.b32.xlu0 %v131, 127
    %v153 = vpop.permute.xlu0 %152
    %v154 = vadd.f32 %v120, %v151
    %v155 = vadd.f32 %v121, %v153
    %156 = vrot.lane.b32.xlu0 %v82, 1
    %v157 = vpop.permute.xlu0 %156
    %158 = vrot.lane.b32.xlu0 %v83, 1
    %v159 = vpop.permute.xlu0 %158
    %160 = vrot.lane.b32.xlu0 %v82, 127
    %v161 = vpop.permute.xlu0 %160
    %162 = vrot.lane.b32.xlu0 %v83, 127
    %v163 = vpop.permute.xlu0 %162
    %vm164 = vcmp.gt.f32.partialorder %v148, 0.0
    %vm165 = vcmp.gt.f32.partialorder %v149, 0.0
    %vm166 = vcmp.lt.f32.partialorder %v148, 0.0
    %vm167 = vcmp.lt.f32.partialorder %v149, 0.0
    %v168 = vsel %vm166, %v157, 0.0
    %v169 = vsel %vm167, %v159, 0.0
    %v170 = vsel %vm164, %v82, %v168
    %v171 = vsel %vm165, %v83, %v169
    %vm172 = vcmp.gt.f32.partialorder %v154, 0.0
    %vm173 = vcmp.gt.f32.partialorder %v155, 0.0
    %vm174 = vcmp.lt.f32.partialorder %v154, 0.0
    %vm175 = vcmp.lt.f32.partialorder %v155, 0.0
    %v176 = vsel %vm174, %v161, 0.0
    %v177 = vsel %vm175, %v163, 0.0
    %v178 = vsel %vm172, %v82, %v176
    %v179 = vsel %vm173, %v83, %v177
    %v180 = vmul.f32 %v142, %v178
    %v181 = vmul.f32 %v143, %v179
    %v182 = vmul.f32 %v136, %v170
    %v183 = vmul.f32 %v137, %v171
    %v184 = vsub.f32 %v180, %v182
    %v185 = vsub.f32 %v181, %v183
    %v186 = vadd.f32 %v184, %v185
    %187 = vadd.xlane.f32.xlu0 %v186
    %v188 = vpop.xlane.xlu0 %187
    %v189 = vrot.slane %v188, 4
    %v190 = vadd.f32 %v188, %v189
    %v191 = vrot.slane %v190, 2
    %v192 = vadd.f32 %v190, %v191
    %v193 = vrot.slane %v192, 1
    %v194 = vadd.f32 %v192, %v193
    %s195 = vtos %v194
    %v196 = vlaneseq
    %v197 = vshrl.u32 %v196, 7
    %v198 = vlaneseq
    %v199 = vand.u32 %v198, 127
    %vm200 = vcmp.eq.s32.totalorder %v197, 0
    %vm201 = vcmp.eq.s32.totalorder %v199, 0
    %vm202 = vmand %vm200, %vm201
    %v203 = vstv %s195
    %v204 = vsel %vm202, %v203, 0.0
    %205 = vst [vmem:[#allocation8] sm:$0xff] %v204
    // Predicated region
    $region26: #{tpu_custom_call.1} parent=1 // pred_check
      _
    $region27: #{tpu_custom_call.1} parent=1 // pred_check_branch
      %207 = sbr.rel (0) target = $region29
    $region28: #{tpu_custom_call.1} parent=1 // pred_region
      %s209 = ssub.s32 128, 128
      %210 = vsyncadd [#allocation4], %s209
      %s212 = sshll.u32 [#allocation8], 4
      %s213 = int_to_ptr.vmem [resolvable:$true] %s212
      %215 = dma.vmem_to_hbm [thread:$0]  %s213, 128, %s3, [#allocation4]
    $region29: #{tpu_custom_call.1} parent=1 // pred_fallthru
      _
    // Predicated region
    $region30: #{tpu_custom_call.1} parent=1 // pred_check
      _
    $region31: #{tpu_custom_call.1} parent=1 // pred_check_branch
      %217 = sbr.rel (0) target = $region33
    $region32: #{tpu_custom_call.1} parent=1 // pred_region
      %218 = dma.done [#allocation4], 128
    $region33: #{tpu_custom_call.1} parent=1 // pred_fallthru
      _
    %219 = vsyncpa [#allocation3], 1
    %220 = vsyncpa [#allocation6], 1
    %221 = vsyncpa [#allocation4], 1

</llo_original>
